<compile_context>
chip_gen: v7x
topology: tpu7x:2x2x1
jax: 0.10.0
libtpu: 0.0.40
codegen_flags: <defaults>
</compile_context>

<pallas_src>
import functools

import jax
import jax.numpy as jnp
from jax.experimental import pallas as pl
from jax.experimental.pallas import tpu as pltpu


_LANE = 128
_DEFAULT_BLOCK_BUDGET = 4 << 20     # ~4 MiB per input buffer (x2 when double-buffered)
_MAX_CHUNKS = 128                   # cap on unrolled 128-lane chunks per tile


def _round_down(x, m):
    return (x // m) * m


# --------------------------------------------------------------------------
# Path 1: small spatial extent -> one tile holds the whole (H*W) axis and
# several batch elements; no scratch, everything in a single grid step.
# --------------------------------------------------------------------------
def _make_small_hw_kernel(inv_hw, b_blk):
    def kernel(x_ref, w1_ref, w2_ref, out_ref):
        x = x_ref[...].astype(jnp.float32)                     # (B, C, HW)
        avg = jnp.sum(x, axis=-1) * inv_hw                     # (B, C)
        mx = jnp.max(x, axis=-1)                               # (B, C)
        pooled = jnp.concatenate([avg, mx], axis=0)            # (2B, C)
        w1 = w1_ref[...]                                       # (MID, C)
        w2 = w2_ref[...]                                       # (C, MID)
        # fc1 on both pooled branches with a single matmul (contract C).
        h = jax.lax.dot_general(pooled, w1, (((1,), (1,)), ((), ())),
                                preferred_element_type=jnp.float32)   # (2B, MID)
        h = jnp.maximum(h, 0.0)
        # fc2 is linear -> add the avg/max branches before the second matmul.
        y = jax.lax.dot_general(h[:b_blk] + h[b_blk:], w2,
                                (((1,), (1,)), ((), ())),
                                preferred_element_type=jnp.float32)   # (B, C)
        out_ref[...] = jax.nn.sigmoid(y)[..., None].astype(out_ref.dtype)
    return kernel


# --------------------------------------------------------------------------
# Path 2: large spatial extent -> tile H*W ("arbitrary" axis), masked tail,
# lane-wide (C, 128) VALU accumulators, single XLU reduce in the finalize.
# --------------------------------------------------------------------------
def _make_large_hw_kernel(C, HW, t_hw, n_tiles, inv_hw, has_tail):
    n_chunks = t_hw // _LANE

    def kernel(x_ref, w1_ref, w2_ref, out_ref, sum_acc, max_acc):
        t = pl.program_id(1)

        @pl.when(t == 0)
        def _init():
            sum_acc[...] = jnp.zeros(sum_acc.shape, sum_acc.dtype)
            max_acc[...] = jnp.full(max_acc.shape, -jnp.inf, max_acc.dtype)

        s = sum_acc[...]                                       # (C, 128) f32
        m = max_acc[...]                                       # (C, 128) f32
        if has_tail:
            base = t * t_hw
            lane = jax.lax.broadcasted_iota(jnp.int32, (C, _LANE), 1)
        for j in range(n_chunks):                               # pure VALU adds/maxes
            c = x_ref[0, :, pl.ds(j * _LANE, _LANE)].astype(jnp.float32)
            if has_tail:
                valid = (base + j * _LANE + lane) < HW
                s = s + jnp.where(valid, c, 0.0)
                m = jnp.maximum(m, jnp.where(valid, c, -jnp.inf))
            else:
                s = s + c
                m = jnp.maximum(m, c)
        sum_acc[...] = s
        max_acc[...] = m

        @pl.when(t == n_tiles - 1)
        def _finalize():
            avg = jnp.sum(sum_acc[...], axis=1, keepdims=True) * inv_hw   # (C, 1)
            mx = jnp.max(max_acc[...], axis=1, keepdims=True)             # (C, 1)
            rhs = jnp.concatenate([avg, mx], axis=1)                      # (C, 2)
            h = jnp.maximum(
                jnp.dot(w1_ref[...], rhs, preferred_element_type=jnp.float32),
                0.0)                                                      # (MID, 2)
            y = jnp.dot(w2_ref[...], h[:, 0:1] + h[:, 1:2],
                        preferred_element_type=jnp.float32)               # (C, 1)
            out_ref[0] = jax.nn.sigmoid(y).astype(out_ref.dtype)
    return kernel


@functools.partial(jax.jit, static_argnames=("block_budget_bytes",))
def channel_attention_pallas(x_nchw, w1, w2, *,
                             block_budget_bytes=_DEFAULT_BLOCK_BUDGET):
    """x_nchw: (N, C, H, W) float.  w1: (C//ratio, C), w2: (C, C//ratio).

    Returns the channel-attention map, shape (N, C, 1, 1), dtype of x.
    """
    N, C, H, W = x_nchw.shape
    MID = w1.shape[0]
    HW = H * W
    inv_hw = 1.0 / float(HW)
    out_dtype = x_nchw.dtype
    itemsize = x_nchw.dtype.itemsize

    x_flat = x_nchw.reshape(N, C, HW)       # metadata-only (NCHW is contiguous)

    per_elem_bytes = C * HW * itemsize
    w_bytes = (w1.size + w2.size) * 4

    if per_elem_bytes <= block_budget_bytes:
        # ----- small-spatial path: block multiple batch elements per step ---
        b_blk = max(1, min(N, block_budget_bytes // per_elem_bytes))
        n_blocks = pl.cdiv(N, b_blk)
        block_bytes = b_blk * per_elem_bytes
        grid = (n_blocks,)
        kernel = _make_small_hw_kernel(inv_hw, b_blk)
        in_specs = [
            pl.BlockSpec((b_blk, C, HW), lambda nb: (nb, 0, 0)),
            pl.BlockSpec((MID, C), lambda nb: (0, 0)),
            pl.BlockSpec((C, MID), lambda nb: (0, 0)),
        ]
        out_specs = pl.BlockSpec((b_blk, C, 1), lambda nb: (nb, 0, 0))
        scratch_shapes = []
        dim_sem = ("parallel",)
    else:
        # ----- large-spatial path: tile over H*W with a masked tail tile ----
        t_hw = _round_down(block_budget_bytes // (C * itemsize), _LANE)
        t_hw = max(_LANE, min(t_hw, _MAX_CHUNKS * _LANE))
        n_tiles = pl.cdiv(HW, t_hw)
        has_tail = (HW % t_hw) != 0
        block_bytes = C * t_hw * itemsize
        grid = (N, n_tiles)
        kernel = _make_large_hw_kernel(C, HW, t_hw, n_tiles, inv_hw, has_tail)
        in_specs = [
            pl.BlockSpec((1, C, t_hw), lambda n, t: (n, 0, t)),
            pl.BlockSpec((MID, C), lambda n, t: (0, 0)),
            pl.BlockSpec((C, MID), lambda n, t: (0, 0)),
        ]
        out_specs = pl.BlockSpec((1, C, 1), lambda n, t: (n, 0, 0))
        scratch_shapes = [
            pltpu.VMEM((C, _LANE), jnp.float32),   # running partial sums
            pltpu.VMEM((C, _LANE), jnp.float32),   # running partial maxes
        ]
        dim_sem = ("parallel", "arbitrary")

    # Explicit scoped-VMEM sizing: double-buffered input block + weights +
    # slack for in-kernel f32 temporaries; clamped for v7x's 64 MiB VMEM.
    vmem_limit = 2 * block_bytes + 2 * w_bytes + 4 * block_bytes + (4 << 20)
    vmem_limit = int(min(max(vmem_limit, 16 << 20), 48 << 20))

    cost = pl.CostEstimate(
        flops=2 * N * C * HW + 8 * N * MID * C,
        transcendentals=N * C,
        bytes_accessed=(N * C * HW * itemsize + (w1.size + w2.size) * 4
                        + N * C * out_dtype.itemsize),
    )

    out = pl.pallas_call(
        kernel,
        out_shape=jax.ShapeDtypeStruct((N, C, 1), out_dtype),
        grid_spec=pltpu.PrefetchScalarGridSpec(
            num_scalar_prefetch=0,
            grid=grid,
            in_specs=in_specs,
            out_specs=out_specs,
            scratch_shapes=scratch_shapes,
        ),
        compiler_params=pltpu.CompilerParams(
            dimension_semantics=dim_sem,
            vmem_limit_bytes=vmem_limit,
        ),
        cost_estimate=cost,
    )(x_flat, w1, w2)

    return out.reshape(N, C, 1, 1)


def reference(x, w1, w2):
    """Pure-JAX reference reproducing the PyTorch forward (NCHW)."""
    xf = x.astype(jnp.float32)
    avg = jnp.mean(xf, axis=(2, 3))                            # (N, C)
    mx = jnp.max(xf, axis=(2, 3))                              # (N, C)

    def mlp(v):
        h = jnp.maximum(v @ w1.T, 0.0)                         # (N, MID)
        return h @ w2.T                                        # (N, C)

    out = jax.nn.sigmoid(mlp(avg) + mlp(mx))                   # (N, C)
    return out[:, :, None, None].astype(x.dtype)


if __name__ == "__main__":
    key = jax.random.PRNGKey(0)

    # ---- Test 1: the module's canonical small-spatial case (path 1) --------
    N, C, H, W = 2, 64, 16, 16          # in_planes=64, ratio=16 -> mid=4
    MID = C // 16
    k_x, k_w1, k_w2, key = jax.random.split(key, 4)
    x = jax.random.normal(k_x, (N, C, H, W), jnp.float32)
    w1 = jax.random.normal(k_w1, (MID, C), jnp.float32) * 0.1   # fc1 (no bias)
    w2 = jax.random.normal(k_w2, (C, MID), jnp.float32) * 0.1   # fc2 (no bias)

    out = jax.block_until_ready(channel_attention_pallas(x, w1, w2))
    ref = jax.block_until_ready(reference(x, w1, w2))
    assert out.shape == (N, C, 1, 1), out.shape
    err1 = float(jnp.max(jnp.abs(out - ref)))
    assert err1 < 5e-5, f"path-1 mismatch vs reference: {err1}"

    # ---- Test 2: force the tiled / masked-tail path (path 2) at tiny shapes
    N2, C2, H2, W2 = 2, 8, 24, 24       # HW=576, not a multiple of the tile
    MID2 = C2 // 4
    k_x2, k_w12, k_w22, key = jax.random.split(key, 4)
    x2 = jax.random.normal(k_x2, (N2, C2, H2, W2), jnp.float32)
    w12 = jax.random.normal(k_w12, (MID2, C2), jnp.float32) * 0.1
    w22 = jax.random.normal(k_w22, (C2, MID2), jnp.float32) * 0.1

    out2 = jax.block_until_ready(
        channel_attention_pallas(x2, w12, w22, block_budget_bytes=8192))
    ref2 = jax.block_until_ready(reference(x2, w12, w22))
    assert out2.shape == (N2, C2, 1, 1), out2.shape
    err2 = float(jnp.max(jnp.abs(out2 - ref2)))
    assert err2 < 5e-5, f"path-2 mismatch vs reference: {err2}"

    print("KERNEL_OK")
</pallas_src>

<mosaic_0001>
module attributes {stable_mosaic.version = 11 : i64} {
  func.func @kernel(%arg0: i32, %arg1: memref<2x64x256xf32, #tpu.memory_space<vmem>>, %arg2: memref<4x64xf32, #tpu.memory_space<vmem>>, %arg3: memref<64x4xf32, #tpu.memory_space<vmem>>, %arg4: memref<2x64x1xf32, #tpu.memory_space<vmem>>) attributes {dimension_semantics = [#tpu.dimension_semantics<parallel>], iteration_bounds = array<i64: 1>, scalar_prefetch = 0 : i64, scratch_operands = 0 : i64, tpu.core_type = #tpu.core_type<tc>, window_params = [{transform_indices = @transform_0, window_bounds = array<i64: 2, 64, 256>}, {pipeline_mode = #tpu.pipeline_mode<synchronous>, transform_indices = @transform_1, window_bounds = array<i64: 4, 64>}, {pipeline_mode = #tpu.pipeline_mode<synchronous>, transform_indices = @transform_2, window_bounds = array<i64: 64, 4>}, {transform_indices = @transform_3, window_bounds = array<i64: 2, 64, 1>}]} {
    %c0 = arith.constant 0 : index
    %c0_0 = arith.constant 0 : index
    %c0_1 = arith.constant 0 : index
    %0 = vector.load %arg1[%c0, %c0_0, %c0_1] : memref<2x64x256xf32, #tpu.memory_space<vmem>>, vector<2x64x256xf32>
    %cst = arith.constant dense<0.000000e+00> : vector<2x64xf32>
    %1 = vector.multi_reduction <add>, %0, %cst [2] : vector<2x64x256xf32> to vector<2x64xf32>
    %cst_2 = arith.constant 3.906250e-03 : f32
    %2 = vector.broadcast %cst_2 : f32 to vector<2x64xf32>
    %3 = arith.mulf %1, %2 : vector<2x64xf32>
    %cst_3 = arith.constant dense<0xFF800000> : vector<2x64xf32>
    %4 = vector.multi_reduction <maximumf>, %0, %cst_3 [2] : vector<2x64x256xf32> to vector<2x64xf32>
    %5 = tpu.concatenate %3, %4 in 0 : vector<2x64xf32>, vector<2x64xf32> -> vector<4x64xf32>
    %c0_4 = arith.constant 0 : index
    %c0_5 = arith.constant 0 : index
    %6 = vector.load %arg2[%c0_4, %c0_5] : memref<4x64xf32, #tpu.memory_space<vmem>>, vector<4x64xf32>
    %c0_6 = arith.constant 0 : index
    %c0_7 = arith.constant 0 : index
    %7 = vector.load %arg3[%c0_6, %c0_7] : memref<64x4xf32, #tpu.memory_space<vmem>>, vector<64x4xf32>
    %cst_8 = arith.constant dense<0.000000e+00> : vector<4x4xf32>
    %8 = tpu.matmul %5, %6, %cst_8 {dimension_numbers = #tpu.dot_dimension_numbers<[1], [1], [0], [0], [0, 0, 1, 0], [], []>} : vector<4x64xf32>, vector<4x64xf32>, vector<4x4xf32> -> vector<4x4xf32>
    %cst_9 = arith.constant 0.000000e+00 : f32
    %9 = vector.broadcast %cst_9 : f32 to vector<4x4xf32>
    %10 = arith.maximumf %8, %9 : vector<4x4xf32>
    %11 = vector.extract_strided_slice %10 {offsets = [0, 0], sizes = [2, 4], strides = [1, 1]} : vector<4x4xf32> to vector<2x4xf32>
    %12 = vector.extract_strided_slice %10 {offsets = [2, 0], sizes = [2, 4], strides = [1, 1]} : vector<4x4xf32> to vector<2x4xf32>
    %13 = arith.addf %11, %12 : vector<2x4xf32>
    %cst_10 = arith.constant dense<0.000000e+00> : vector<2x64xf32>
    %14 = tpu.matmul %13, %7, %cst_10 {dimension_numbers = #tpu.dot_dimension_numbers<[1], [1], [0], [0], [0, 0, 1, 0], [], []>} : vector<2x4xf32>, vector<64x4xf32>, vector<2x64xf32> -> vector<2x64xf32>
    %15 = arith.negf %14 : vector<2x64xf32>
    %16 = math.exp %15 : vector<2x64xf32>
    %cst_11 = arith.constant 1.000000e+00 : f32
    %17 = vector.broadcast %cst_11 : f32 to vector<2x64xf32>
    %18 = arith.addf %17, %16 : vector<2x64xf32>
    %19 = arith.divf %17, %18 : vector<2x64xf32>
    %20 = vector.shape_cast %19 : vector<2x64xf32> to vector<2x64x1xf32>
    %c0_12 = arith.constant 0 : index
    %c0_13 = arith.constant 0 : index
    %c0_14 = arith.constant 0 : index
    %21 = vector.load %arg4[%c0_12, %c0_13, %c0_14] : memref<2x64x1xf32, #tpu.memory_space<vmem>>, vector<2x64x1xf32>
    tpu.vector_store %arg4[%c0_12, %c0_13, %c0_14], %20 {strides = array<i32>} : memref<2x64x1xf32, #tpu.memory_space<vmem>>, vector<2x64x1xf32>,
    return
  }
  func.func @transform_0(%arg0: i32) -> (i32, i32, i32) {
    %c0_i32 = arith.constant 0 : i32
    %c0_i32_0 = arith.constant 0 : i32
    %c0_i32_1 = arith.constant 0 : i32
    return %arg0, %c0_i32, %c0_i32_0 : i32, i32, i32
  }
  func.func @transform_1(%arg0: i32) -> (i32, i32) {
    %c0_i32 = arith.constant 0 : i32
    %c0_i32_0 = arith.constant 0 : i32
    %c0_i32_1 = arith.constant 0 : i32
    return %c0_i32, %c0_i32_0 : i32, i32
  }
  func.func @transform_2(%arg0: i32) -> (i32, i32) {
    %c0_i32 = arith.constant 0 : i32
    %c0_i32_0 = arith.constant 0 : i32
    %c0_i32_1 = arith.constant 0 : i32
    return %c0_i32, %c0_i32_0 : i32, i32
  }
  func.func @transform_3(%arg0: i32) -> (i32, i32, i32) {
    %c0_i32 = arith.constant 0 : i32
    %c0_i32_0 = arith.constant 0 : i32
    %c0_i32_1 = arith.constant 0 : i32
    return %arg0, %c0_i32, %c0_i32_0 : i32, i32, i32
  }
}

</mosaic_0001>

<llo_original>
// kernel: channel_attention_pallas.1
$region0: #{channel_attention_pallas.1}
  #allocation0 [shape = 'u32[]', space=smem, size = 0x4, offset = 0x4, fixed_abs, tag = 'smem constant byte address 0x4 - core index']
  #allocation1 [shape = 'u32[144,128]{1,0:T(1,128)}', space=vmem, size = 0x12000, scoped, tag = 'internal scratch']
  %s0 = inlined_call_operand.vmem [shape: f32[2,64,256], index: 0, kind: input, shape index: {}]
  %s1 = inlined_call_operand.vmem [shape: f32[4,64], index: 1, kind: input, shape index: {}]
  %s2 = inlined_call_operand.vmem [shape: f32[64,4], index: 2, kind: input, shape index: {}]
  %s3 = inlined_call_operand.vmem [shape: f32[2,64,1], index: 3, kind: output, shape index: {}]
  %s4 = sld [smem:[#allocation0]]
  $region22: #{channel_attention_pallas.1} parent=0
    _
  %s6 = ssub.s32 1, %s4
  %s7 = scalar_select 0, %s6, %s4
  // Predicated region
  $region2: #{channel_attention_pallas.1} parent=0 // pred_check
    _
  $region3: #{channel_attention_pallas.1} parent=0 // pred_check_branch
    %9 = sbr.rel (0) target = $region5
  $region4: #{channel_attention_pallas.1} parent=0 // pred_region
    _
  $region5: #{channel_attention_pallas.1} parent=0 // pred_fallthru
    _
  // Predicated region
  $region6: #{channel_attention_pallas.1} parent=0 // pred_check
    _
  $region7: #{channel_attention_pallas.1} parent=0 // pred_check_branch
    %11 = sbr.rel (0) target = $region9
  $region8: #{channel_attention_pallas.1} parent=0 // pred_region
    _
  $region9: #{channel_attention_pallas.1} parent=0 // pred_fallthru
    _
  // Predicated region
  $region10: #{channel_attention_pallas.1} parent=0 // pred_check
    _
  $region11: #{channel_attention_pallas.1} parent=0 // pred_check_branch
    %13 = sbr.rel (0) target = $region13
  $region12: #{channel_attention_pallas.1} parent=0 // pred_region
    _
  $region13: #{channel_attention_pallas.1} parent=0 // pred_fallthru
    _
  %v14 = vld [vmem:[%s0] sm:$0xff]
  %v15 = vld [vmem:[%s0 + $0x8] sm:$0xff]
  %v16 = vld [vmem:[%s0 + $0x10] sm:$0xff]
  %v17 = vld [vmem:[%s0 + $0x18] sm:$0xff]
  %v18 = vld [vmem:[%s0 + $0x20] sm:$0xff]
  %v19 = vld [vmem:[%s0 + $0x28] sm:$0xff]
  %v20 = vld [vmem:[%s0 + $0x30] sm:$0xff]
  %v21 = vld [vmem:[%s0 + $0x38] sm:$0xff]
  %v22 = vld [vmem:[%s0 + $0x40] sm:$0xff]
  %v23 = vld [vmem:[%s0 + $0x48] sm:$0xff]
  %v24 = vld [vmem:[%s0 + $0x50] sm:$0xff]
  %v25 = vld [vmem:[%s0 + $0x58] sm:$0xff]
  %v26 = vld [vmem:[%s0 + $0x60] sm:$0xff]
  %v27 = vld [vmem:[%s0 + $0x68] sm:$0xff]
  %v28 = vld [vmem:[%s0 + $0x70] sm:$0xff]
  %v29 = vld [vmem:[%s0 + $0x78] sm:$0xff]
  %v30 = vld [vmem:[%s0 + $0x80] sm:$0xff]
  %v31 = vld [vmem:[%s0 + $0x88] sm:$0xff]
  %v32 = vld [vmem:[%s0 + $0x90] sm:$0xff]
  %v33 = vld [vmem:[%s0 + $0x98] sm:$0xff]
  %v34 = vld [vmem:[%s0 + $0xa0] sm:$0xff]
  %v35 = vld [vmem:[%s0 + $0xa8] sm:$0xff]
  %v36 = vld [vmem:[%s0 + $0xb0] sm:$0xff]
  %v37 = vld [vmem:[%s0 + $0xb8] sm:$0xff]
  %v38 = vld [vmem:[%s0 + $0xc0] sm:$0xff]
  %v39 = vld [vmem:[%s0 + $0xc8] sm:$0xff]
  %v40 = vld [vmem:[%s0 + $0xd0] sm:$0xff]
  %v41 = vld [vmem:[%s0 + $0xd8] sm:$0xff]
  %v42 = vld [vmem:[%s0 + $0xe0] sm:$0xff]
  %v43 = vld [vmem:[%s0 + $0xe8] sm:$0xff]
  %v44 = vld [vmem:[%s0 + $0xf0] sm:$0xff]
  %v45 = vld [vmem:[%s0 + $0xf8] sm:$0xff]
  %v46 = vadd.f32 %v14, %v15
  %47 = vadd.xlane.f32.xlu0 %v46
  %v48 = vpop.xlane.xlu0 %47
  %v49 = vadd.f32 %v16, %v17
  %50 = vadd.xlane.f32.xlu0 %v49
  %v51 = vpop.xlane.xlu0 %50
  %v52 = vadd.f32 %v18, %v19
  %53 = vadd.xlane.f32.xlu0 %v52
  %v54 = vpop.xlane.xlu0 %53
  %v55 = vadd.f32 %v20, %v21
  %56 = vadd.xlane.f32.xlu0 %v55
  %v57 = vpop.xlane.xlu0 %56
  %v58 = vadd.f32 %v22, %v23
  %59 = vadd.xlane.f32.xlu0 %v58
  %v60 = vpop.xlane.xlu0 %59
  %v61 = vadd.f32 %v24, %v25
  %62 = vadd.xlane.f32.xlu0 %v61
  %v63 = vpop.xlane.xlu0 %62
  %v64 = vadd.f32 %v26, %v27
  %65 = vadd.xlane.f32.xlu0 %v64
  %v66 = vpop.xlane.xlu0 %65
  %v67 = vadd.f32 %v28, %v29
  %68 = vadd.xlane.f32.xlu0 %v67
  %v69 = vpop.xlane.xlu0 %68
  %v70 = vadd.f32 %v30, %v31
  %71 = vadd.xlane.f32.xlu0 %v70
  %v72 = vpop.xlane.xlu0 %71
  %v73 = vadd.f32 %v32, %v33
  %74 = vadd.xlane.f32.xlu0 %v73
  %v75 = vpop.xlane.xlu0 %74
  %v76 = vadd.f32 %v34, %v35
  %77 = vadd.xlane.f32.xlu0 %v76
  %v78 = vpop.xlane.xlu0 %77
  %v79 = vadd.f32 %v36, %v37
  %80 = vadd.xlane.f32.xlu0 %v79
  %v81 = vpop.xlane.xlu0 %80
  %v82 = vadd.f32 %v38, %v39
  %83 = vadd.xlane.f32.xlu0 %v82
  %v84 = vpop.xlane.xlu0 %83
  %v85 = vadd.f32 %v40, %v41
  %86 = vadd.xlane.f32.xlu0 %v85
  %v87 = vpop.xlane.xlu0 %86
  %v88 = vadd.f32 %v42, %v43
  %89 = vadd.xlane.f32.xlu0 %v88
  %v90 = vpop.xlane.xlu0 %89
  %v91 = vadd.f32 %v44, %v45
  %92 = vadd.xlane.f32.xlu0 %v91
  %v93 = vpop.xlane.xlu0 %92
  %v94 = vmul.f32 %v48, 0.00390625
  %v95 = vmul.f32 %v51, 0.00390625
  %v96 = vmul.f32 %v54, 0.00390625
  %v97 = vmul.f32 %v57, 0.00390625
  %v98 = vmul.f32 %v60, 0.00390625
  %v99 = vmul.f32 %v63, 0.00390625
  %v100 = vmul.f32 %v66, 0.00390625
  %v101 = vmul.f32 %v69, 0.00390625
  %v102 = vmul.f32 %v72, 0.00390625
  %v103 = vmul.f32 %v75, 0.00390625
  %v104 = vmul.f32 %v78, 0.00390625
  %v105 = vmul.f32 %v81, 0.00390625
  %v106 = vmul.f32 %v84, 0.00390625
  %v107 = vmul.f32 %v87, 0.00390625
  %v108 = vmul.f32 %v90, 0.00390625
  %v109 = vmul.f32 %v93, 0.00390625
  %v110 = vmax.f32 %v14, %v15
  %111 = vmax.xlane.f32.xlu0 %v110
  %v112 = vpop.xlane.xlu0 %111
  %v113 = vmax.f32 %v16, %v17
  %114 = vmax.xlane.f32.xlu0 %v113
  %v115 = vpop.xlane.xlu0 %114
  %v116 = vmax.f32 %v18, %v19
  %117 = vmax.xlane.f32.xlu0 %v116
  %v118 = vpop.xlane.xlu0 %117
  %v119 = vmax.f32 %v20, %v21
  %120 = vmax.xlane.f32.xlu0 %v119
  %v121 = vpop.xlane.xlu0 %120
  %v122 = vmax.f32 %v22, %v23
  %123 = vmax.xlane.f32.xlu0 %v122
  %v124 = vpop.xlane.xlu0 %123
  %v125 = vmax.f32 %v24, %v25
  %126 = vmax.xlane.f32.xlu0 %v125
  %v127 = vpop.xlane.xlu0 %126
  %v128 = vmax.f32 %v26, %v27
  %129 = vmax.xlane.f32.xlu0 %v128
  %v130 = vpop.xlane.xlu0 %129
  %v131 = vmax.f32 %v28, %v29
  %132 = vmax.xlane.f32.xlu0 %v131
  %v133 = vpop.xlane.xlu0 %132
  %v134 = vmax.f32 %v30, %v31
  %135 = vmax.xlane.f32.xlu0 %v134
  %v136 = vpop.xlane.xlu0 %135
  %v137 = vmax.f32 %v32, %v33
  %138 = vmax.xlane.f32.xlu0 %v137
  %v139 = vpop.xlane.xlu0 %138
  %v140 = vmax.f32 %v34, %v35
  %141 = vmax.xlane.f32.xlu0 %v140
  %v142 = vpop.xlane.xlu0 %141
  %v143 = vmax.f32 %v36, %v37
  %144 = vmax.xlane.f32.xlu0 %v143
  %v145 = vpop.xlane.xlu0 %144
  %v146 = vmax.f32 %v38, %v39
  %147 = vmax.xlane.f32.xlu0 %v146
  %v148 = vpop.xlane.xlu0 %147
  %v149 = vmax.f32 %v40, %v41
  %150 = vmax.xlane.f32.xlu0 %v149
  %v151 = vpop.xlane.xlu0 %150
  %v152 = vmax.f32 %v42, %v43
  %153 = vmax.xlane.f32.xlu0 %v152
  %v154 = vpop.xlane.xlu0 %153
  %v155 = vmax.f32 %v44, %v45
  %156 = vmax.xlane.f32.xlu0 %v155
  %v157 = vpop.xlane.xlu0 %156
  %v174 = vlaneseq
  %v175 = vand.u32 %v174, 127
  %v176 = vlaneseq
  %v177 = vshrl.u32 %v176, 7
  %v178 = vsub.s32 %v175, %v177
  %v179 = vrot.slane %v94, %v178
  %v180 = vadd.s32 %v175, 4294967288
  %v181 = vlaneseq
  %v182 = vshrl.u32 %v181, 7
  %v183 = vsub.s32 %v180, %v182
  %v184 = vrot.slane %v95, %v183
  %vm185 = vcmask 130112
  %v186 = vsel %vm185, %v184, %v179
  %v187 = vadd.s32 %v175, 4294967280
  %v188 = vlaneseq
  %v189 = vshrl.u32 %v188, 7
  %v190 = vsub.s32 %v187, %v189
  %v191 = vrot.slane %v96, %v190
  %vm192 = vcmask 195712
  %v193 = vsel %vm192, %v191, %v186
  %v194 = vadd.s32 %v175, 4294967272
  %v195 = vlaneseq
  %v196 = vshrl.u32 %v195, 7
  %v197 = vsub.s32 %v194, %v196
  %v198 = vrot.slane %v97, %v197
  %vm199 = vcmask 261312
  %v200 = vsel %vm199, %v198, %v193
  %v201 = vadd.s32 %v175, 4294967264
  %v202 = vlaneseq
  %v203 = vshrl.u32 %v202, 7
  %v204 = vsub.s32 %v201, %v203
  %v205 = vrot.slane %v98, %v204
  %vm206 = vcmask 326912
  %v207 = vsel %vm206, %v205, %v200
  %v208 = vadd.s32 %v175, 4294967256
  %v209 = vlaneseq
  %v210 = vshrl.u32 %v209, 7
  %v211 = vsub.s32 %v208, %v210
  %v212 = vrot.slane %v99, %v211
  %vm213 = vcmask 392512
  %v214 = vsel %vm213, %v212, %v207
  %v215 = vadd.s32 %v175, 4294967248
  %v216 = vlaneseq
  %v217 = vshrl.u32 %v216, 7
  %v218 = vsub.s32 %v215, %v217
  %v219 = vrot.slane %v100, %v218
  %vm220 = vcmask 458112
  %v221 = vsel %vm220, %v219, %v214
  %v222 = vadd.s32 %v175, 4294967240
  %v223 = vlaneseq
  %v224 = vshrl.u32 %v223, 7
  %v225 = vsub.s32 %v222, %v224
  %v226 = vrot.slane %v101, %v225
  %vm227 = vcmask 523712
  %v228 = vsel %vm227, %v226, %v221
  %v229 = vlaneseq
  %v230 = vshrl.u32 %v229, 7
  %v231 = vsub.s32 %v175, %v230
  %v232 = vrot.slane %v102, %v231
  %v233 = vlaneseq
  %v234 = vshrl.u32 %v233, 7
  %v235 = vsub.s32 %v180, %v234
  %v236 = vrot.slane %v103, %v235
  %v237 = vsel %vm185, %v236, %v232
  %v238 = vlaneseq
  %v239 = vshrl.u32 %v238, 7
  %v240 = vsub.s32 %v187, %v239
  %v241 = vrot.slane %v104, %v240
  %v242 = vsel %vm192, %v241, %v237
  %v243 = vlaneseq
  %v244 = vshrl.u32 %v243, 7
  %v245 = vsub.s32 %v194, %v244
  %v246 = vrot.slane %v105, %v245
  %v247 = vsel %vm199, %v246, %v242
  %v248 = vlaneseq
  %v249 = vshrl.u32 %v248, 7
  %v250 = vsub.s32 %v201, %v249
  %v251 = vrot.slane %v106, %v250
  %v252 = vsel %vm206, %v251, %v247
  %v253 = vlaneseq
  %v254 = vshrl.u32 %v253, 7
  %v255 = vsub.s32 %v208, %v254
  %v256 = vrot.slane %v107, %v255
  %v257 = vsel %vm213, %v256, %v252
  %v258 = vlaneseq
  %v259 = vshrl.u32 %v258, 7
  %v260 = vsub.s32 %v215, %v259
  %v261 = vrot.slane %v108, %v260
  %v262 = vsel %vm220, %v261, %v257
  %v263 = vlaneseq
  %v264 = vshrl.u32 %v263, 7
  %v265 = vsub.s32 %v222, %v264
  %v266 = vrot.slane %v109, %v265
  %v267 = vsel %vm227, %v266, %v262
  %vm268 = vcmask 1041409
  %v269 = vsel %vm268, %v267, %v228
  %v287 = vlaneseq
  %v288 = vshrl.u32 %v287, 7
  %v289 = vsub.s32 %v175, %v288
  %v290 = vrot.slane %v112, %v289
  %v291 = vlaneseq
  %v292 = vshrl.u32 %v291, 7
  %v293 = vsub.s32 %v180, %v292
  %v294 = vrot.slane %v115, %v293
  %v295 = vsel %vm185, %v294, %v290
  %v296 = vlaneseq
  %v297 = vshrl.u32 %v296, 7
  %v298 = vsub.s32 %v187, %v297
  %v299 = vrot.slane %v118, %v298
  %v300 = vsel %vm192, %v299, %v295
  %v301 = vlaneseq
  %v302 = vshrl.u32 %v301, 7
  %v303 = vsub.s32 %v194, %v302
  %v304 = vrot.slane %v121, %v303
  %v305 = vsel %vm199, %v304, %v300
  %v306 = vlaneseq
  %v307 = vshrl.u32 %v306, 7
  %v308 = vsub.s32 %v201, %v307
  %v309 = vrot.slane %v124, %v308
  %v310 = vsel %vm206, %v309, %v305
  %v311 = vlaneseq
  %v312 = vshrl.u32 %v311, 7
  %v313 = vsub.s32 %v208, %v312
  %v314 = vrot.slane %v127, %v313
  %v315 = vsel %vm213, %v314, %v310
  %v316 = vlaneseq
  %v317 = vshrl.u32 %v316, 7
  %v318 = vsub.s32 %v215, %v317
  %v319 = vrot.slane %v130, %v318
  %v320 = vsel %vm220, %v319, %v315
  %v321 = vlaneseq
  %v322 = vshrl.u32 %v321, 7
  %v323 = vsub.s32 %v222, %v322
  %v324 = vrot.slane %v133, %v323
  %v325 = vsel %vm227, %v324, %v320
  %v326 = vlaneseq
  %v327 = vshrl.u32 %v326, 7
  %v328 = vsub.s32 %v175, %v327
  %v329 = vrot.slane %v136, %v328
  %v330 = vlaneseq
  %v331 = vshrl.u32 %v330, 7
  %v332 = vsub.s32 %v180, %v331
  %v333 = vrot.slane %v139, %v332
  %v334 = vsel %vm185, %v333, %v329
  %v335 = vlaneseq
  %v336 = vshrl.u32 %v335, 7
  %v337 = vsub.s32 %v187, %v336
  %v338 = vrot.slane %v142, %v337
  %v339 = vsel %vm192, %v338, %v334
  %v340 = vlaneseq
  %v341 = vshrl.u32 %v340, 7
  %v342 = vsub.s32 %v194, %v341
  %v343 = vrot.slane %v145, %v342
  %v344 = vsel %vm199, %v343, %v339
  %v345 = vlaneseq
  %v346 = vshrl.u32 %v345, 7
  %v347 = vsub.s32 %v201, %v346
  %v348 = vrot.slane %v148, %v347
  %v349 = vsel %vm206, %v348, %v344
  %v350 = vlaneseq
  %v351 = vshrl.u32 %v350, 7
  %v352 = vsub.s32 %v208, %v351
  %v353 = vrot.slane %v151, %v352
  %v354 = vsel %vm213, %v353, %v349
  %v355 = vlaneseq
  %v356 = vshrl.u32 %v355, 7
  %v357 = vsub.s32 %v215, %v356
  %v358 = vrot.slane %v154, %v357
  %v359 = vsel %vm220, %v358, %v354
  %v360 = vlaneseq
  %v361 = vshrl.u32 %v360, 7
  %v362 = vsub.s32 %v222, %v361
  %v363 = vrot.slane %v157, %v362
  %v364 = vsel %vm227, %v363, %v359
  %vm365 = vcmask 1043459
  %v366 = vsel %vm365, %v364, %v325
  %vm368 = vcmask 1041408
  %v369 = vsel %vm368, %v269, %v366
  %v370 = vld [vmem:[%s1] sm:$0xf]
  %v371 = vld [vmem:[%s2] sm:$0xff]
  %v372 = vld [vmem:[%s2 + $0x8] sm:$0xff]
  %v373 = vld [vmem:[%s2 + $0x10] sm:$0xff]
  %v374 = vld [vmem:[%s2 + $0x18] sm:$0xff]
  %v375 = vld [vmem:[%s2 + $0x20] sm:$0xff]
  %v376 = vld [vmem:[%s2 + $0x28] sm:$0xff]
  %v377 = vld [vmem:[%s2 + $0x30] sm:$0xff]
  %v378 = vld [vmem:[%s2 + $0x38] sm:$0xff]
  %vm379 = vcmask 523264
  %v381 = vsel %vm379, %v369, 0
  %v384 = vsel %vm379, %v370, 0
  %386 = vmatprep.subr.mxu0 0.0
  %387 = vmatpush1.xpose.msra.mxu0 %v384
  %388 = vmatprep.subr.mxu0 0.0
  %389 = vmatpush1.xpose.msra.mxu0 0.0
  %390 = vmatprep.subr.mxu0 0.0
  %391 = vmatpush1.xpose.msra.mxu0 0.0
  %392 = vmatprep.subr.mxu0 0.0
  %393 = vmatpush1.xpose.msra.mxu0 0.0
  %394 = vmatprep.subr.mxu0 0.0
  %395 = vmatpush1.xpose.msra.mxu0 0.0
  %396 = vmatprep.subr.mxu0 0.0
  %397 = vmatpush1.xpose.msra.mxu0 0.0
  %398 = vmatprep.subr.mxu0 0.0
  %399 = vmatpush1.xpose.msra.mxu0 0.0
  %400 = vmatprep.subr.mxu0 0.0
  %401 = vmatpush1.xpose.msra.mxu0 0.0
  %402 = vmatprep.subr.mxu0 0.0
  %403 = vmatpush1.xpose.msra.mxu0 0.0
  %404 = vmatprep.subr.mxu0 0.0
  %405 = vmatpush1.xpose.msra.mxu0 0.0
  %406 = vmatprep.subr.mxu0 0.0
  %407 = vmatpush1.xpose.msra.mxu0 0.0
  %408 = vmatprep.subr.mxu0 0.0
  %409 = vmatpush1.xpose.msra.mxu0 0.0
  %410 = vmatprep.subr.mxu0 0.0
  %411 = vmatpush1.xpose.msra.mxu0 0.0
  %412 = vmatprep.subr.mxu0 0.0
  %413 = vmatpush1.xpose.msra.mxu0 0.0
  %414 = vmatprep.subr.mxu0 0.0
  %415 = vmatpush1.xpose.msra.mxu0 0.0
  %416 = vmatprep.subr.mxu0 0.0
  %417 = vmatpush1.xpose.msra.mxu0 0.0
  %418 = vmatprep.subr.mxu0 0.0
  %419 = vmatpush1.xpose.msra.mxu0 0.0
  %420 = vmatprep.subr.mxu0 0.0
  %421 = vmatpush1.xpose.msra.mxu0 0.0
  %422 = vmatprep.subr.mxu0 0.0
  %423 = vmatpush1.xpose.msra.mxu0 0.0
  %424 = vmatprep.subr.mxu0 0.0
  %425 = vmatpush1.xpose.msra.mxu0 0.0
  %426 = vmatprep.subr.mxu0 0.0
  %427 = vmatpush1.xpose.msra.mxu0 0.0
  %428 = vmatprep.subr.mxu0 0.0
  %429 = vmatpush1.xpose.msra.mxu0 0.0
  %430 = vmatprep.subr.mxu0 0.0
  %431 = vmatpush1.xpose.msra.mxu0 0.0
  %432 = vmatprep.subr.mxu0 0.0
  %433 = vmatpush1.xpose.msra.mxu0 0.0
  %434 = vmatprep.subr.mxu0 0.0
  %435 = vmatpush1.xpose.msra.mxu0 0.0
  %436 = vmatprep.subr.mxu0 0.0
  %437 = vmatpush1.xpose.msra.mxu0 0.0
  %438 = vmatprep.subr.mxu0 0.0
  %439 = vmatpush1.xpose.msra.mxu0 0.0
  %440 = vmatprep.subr.mxu0 0.0
  %441 = vmatpush1.xpose.msra.mxu0 0.0
  %442 = vmatprep.subr.mxu0 0.0
  %443 = vmatpush1.xpose.msra.mxu0 0.0
  %444 = vmatprep.subr.mxu0 0.0
  %445 = vmatpush1.xpose.msra.mxu0 0.0
  %446 = vmatprep.subr.mxu0 0.0
  %447 = vmatpush1.xpose.msra.mxu0 0.0
  %448 = vmatprep.subr.mxu0 0.0
  %449 = vmatpush1.xpose.msra.mxu0 0.0
  %450 = vmatprep.mubr.f32.mxu0 0.0
  %451 = vmatmul.mubr.f32.gmra.mrb[0].mxu0 %v381
  %v452 = vpop.f32.mrb[0].mxu0
  %v453 = vadd.f32 0.0, %v452
  %v454 = vpop.f32.mrb[0].mxu0
  %455 = vdwg.mxu0
  %v456 = vmax.f32 %v453, 0.0
  %v458 = vrot.slane %v456, 2
  %v460 = vadd.f32 %v456, %v458
  %vm461 = vcmask 31744
  %v463 = vsel %vm461, %v460, 0
  %v466 = vsel %vm461, %v371, 0
  %v469 = vsel %vm461, %v372, 0
  %v472 = vsel %vm461, %v373, 0
  %v475 = vsel %vm461, %v374, 0
  %v478 = vsel %vm461, %v375, 0
  %v481 = vsel %vm461, %v376, 0
  %v484 = vsel %vm461, %v377, 0
  %v487 = vsel %vm461, %v378, 0
  %489 = vmatprep.subr.mxu0 0.0
  %490 = vmatpush1.xpose.msra.mxu0 %v466
  %491 = vmatprep.subr.mxu0 0.0
  %492 = vmatpush1.xpose.msra.mxu0 %v469
  %493 = vmatprep.subr.mxu0 0.0
  %494 = vmatpush1.xpose.msra.mxu0 %v472
  %495 = vmatprep.subr.mxu0 0.0
  %496 = vmatpush1.xpose.msra.mxu0 %v475
  %497 = vmatprep.subr.mxu0 0.0
  %498 = vmatpush1.xpose.msra.mxu0 %v478
  %499 = vmatprep.subr.mxu0 0.0
  %500 = vmatpush1.xpose.msra.mxu0 %v481
  %501 = vmatprep.subr.mxu0 0.0
  %502 = vmatpush1.xpose.msra.mxu0 %v484
  %503 = vmatprep.subr.mxu0 0.0
  %504 = vmatpush1.xpose.msra.mxu0 %v487
  %505 = vmatprep.subr.mxu0 0.0
  %506 = vmatpush1.xpose.msra.mxu0 0.0
  %507 = vmatprep.subr.mxu0 0.0
  %508 = vmatpush1.xpose.msra.mxu0 0.0
  %509 = vmatprep.subr.mxu0 0.0
  %510 = vmatpush1.xpose.msra.mxu0 0.0
  %511 = vmatprep.subr.mxu0 0.0
  %512 = vmatpush1.xpose.msra.mxu0 0.0
  %513 = vmatprep.subr.mxu0 0.0
  %514 = vmatpush1.xpose.msra.mxu0 0.0
  %515 = vmatprep.subr.mxu0 0.0
  %516 = vmatpush1.xpose.msra.mxu0 0.0
  %517 = vmatprep.subr.mxu0 0.0
  %518 = vmatpush1.xpose.msra.mxu0 0.0
  %519 = vmatprep.subr.mxu0 0.0
  %520 = vmatpush1.xpose.msra.mxu0 0.0
  %521 = vmatprep.subr.mxu0 0.0
  %522 = vmatpush1.xpose.msra.mxu0 0.0
  %523 = vmatprep.subr.mxu0 0.0
  %524 = vmatpush1.xpose.msra.mxu0 0.0
  %525 = vmatprep.subr.mxu0 0.0
  %526 = vmatpush1.xpose.msra.mxu0 0.0
  %527 = vmatprep.subr.mxu0 0.0
  %528 = vmatpush1.xpose.msra.mxu0 0.0
  %529 = vmatprep.subr.mxu0 0.0
  %530 = vmatpush1.xpose.msra.mxu0 0.0
  %531 = vmatprep.subr.mxu0 0.0
  %532 = vmatpush1.xpose.msra.mxu0 0.0
  %533 = vmatprep.subr.mxu0 0.0
  %534 = vmatpush1.xpose.msra.mxu0 0.0
  %535 = vmatprep.subr.mxu0 0.0
  %536 = vmatpush1.xpose.msra.mxu0 0.0
  %537 = vmatprep.subr.mxu0 0.0
  %538 = vmatpush1.xpose.msra.mxu0 0.0
  %539 = vmatprep.subr.mxu0 0.0
  %540 = vmatpush1.xpose.msra.mxu0 0.0
  %541 = vmatprep.subr.mxu0 0.0
  %542 = vmatpush1.xpose.msra.mxu0 0.0
  %543 = vmatprep.subr.mxu0 0.0
  %544 = vmatpush1.xpose.msra.mxu0 0.0
  %545 = vmatprep.subr.mxu0 0.0
  %546 = vmatpush1.xpose.msra.mxu0 0.0
  %547 = vmatprep.subr.mxu0 0.0
  %548 = vmatpush1.xpose.msra.mxu0 0.0
  %549 = vmatprep.subr.mxu0 0.0
  %550 = vmatpush1.xpose.msra.mxu0 0.0
  %551 = vmatprep.subr.mxu0 0.0
  %552 = vmatpush1.xpose.msra.mxu0 0.0
  %553 = vmatprep.mubr.f32.mxu0 0.0
  %554 = vmatmul.mubr.f32.gmra.mrb[0].mxu0 %v463
  %v555 = vpop.f32.mrb[0].mxu0
  %v556 = vadd.f32 0.0, %v555
  %v557 = vpop.f32.mrb[0].mxu0
  %558 = vdwg.mxu0
  %v559 = vxor.u32 %v556, 2147483648
  %v560 = vmul.f32 %v559, 1.442695
  %v561 = vpow.pop %v560
  %v562 = vadd.f32 %v561, 1.0
  %v563 = vrcp.pop %v562
  %v564 = vmul.f32 1.0, %v563
  %v565 = vlaneseq
  %v566 = vshrl.u32 %v565, 7
  %v567 = vsub.s32 0, %v566
  %v568 = vrot.slane %v564, %v567
  %570 = vbcast.lane.b32.xlu0 %v568, 256
  %v571 = vpop.permute.xlu0 %570
  %s573 = sor.u32 256, 8
  %574 = vbcast.lane.b32.xlu0 %v568, %s573
  %v575 = vpop.permute.xlu0 %574
  %s577 = sor.u32 256, 16
  %578 = vbcast.lane.b32.xlu0 %v568, %s577
  %v579 = vpop.permute.xlu0 %578
  %s581 = sor.u32 256, 24
  %582 = vbcast.lane.b32.xlu0 %v568, %s581
  %v583 = vpop.permute.xlu0 %582
  %s585 = sor.u32 256, 32
  %586 = vbcast.lane.b32.xlu0 %v568, %s585
  %v587 = vpop.permute.xlu0 %586
  %s589 = sor.u32 256, 40
  %590 = vbcast.lane.b32.xlu0 %v568, %s589
  %v591 = vpop.permute.xlu0 %590
  %s593 = sor.u32 256, 48
  %594 = vbcast.lane.b32.xlu0 %v568, %s593
  %v595 = vpop.permute.xlu0 %594
  %s597 = sor.u32 256, 56
  %598 = vbcast.lane.b32.xlu0 %v568, %s597
  %v599 = vpop.permute.xlu0 %598
  %v600 = vlaneseq
  %v601 = vshrl.u32 %v600, 7
  %v602 = vsub.s32 1, %v601
  %v603 = vrot.slane %v564, %v602
  %605 = vbcast.lane.b32.xlu0 %v603, 256
  %v606 = vpop.permute.xlu0 %605
  %s608 = sor.u32 256, 8
  %609 = vbcast.lane.b32.xlu0 %v603, %s608
  %v610 = vpop.permute.xlu0 %609
  %s612 = sor.u32 256, 16
  %613 = vbcast.lane.b32.xlu0 %v603, %s612
  %v614 = vpop.permute.xlu0 %613
  %s616 = sor.u32 256, 24
  %617 = vbcast.lane.b32.xlu0 %v603, %s616
  %v618 = vpop.permute.xlu0 %617
  %s620 = sor.u32 256, 32
  %621 = vbcast.lane.b32.xlu0 %v603, %s620
  %v622 = vpop.permute.xlu0 %621
  %s624 = sor.u32 256, 40
  %625 = vbcast.lane.b32.xlu0 %v603, %s624
  %v626 = vpop.permute.xlu0 %625
  %s628 = sor.u32 256, 48
  %629 = vbcast.lane.b32.xlu0 %v603, %s628
  %v630 = vpop.permute.xlu0 %629
  %s632 = sor.u32 256, 56
  %633 = vbcast.lane.b32.xlu0 %v603, %s632
  %v634 = vpop.permute.xlu0 %633
  %vm635 = vcmask 7168
  %636 = vst.msk [vmem:[%s3] sm:$0xff] %vm635, %v571
  %637 = vst.msk [vmem:[%s3 + $0x8] sm:$0xff] %vm635, %v575
  %638 = vst.msk [vmem:[%s3 + $0x10] sm:$0xff] %vm635, %v579
  %639 = vst.msk [vmem:[%s3 + $0x18] sm:$0xff] %vm635, %v583
  %640 = vst.msk [vmem:[%s3 + $0x20] sm:$0xff] %vm635, %v587
  %641 = vst.msk [vmem:[%s3 + $0x28] sm:$0xff] %vm635, %v591
  %642 = vst.msk [vmem:[%s3 + $0x30] sm:$0xff] %vm635, %v595
  %643 = vst.msk [vmem:[%s3 + $0x38] sm:$0xff] %vm635, %v599
  %644 = vst.msk [vmem:[%s3 + $0x40] sm:$0xff] %vm635, %v606
  %645 = vst.msk [vmem:[%s3 + $0x48] sm:$0xff] %vm635, %v610
  %646 = vst.msk [vmem:[%s3 + $0x50] sm:$0xff] %vm635, %v614
  %647 = vst.msk [vmem:[%s3 + $0x58] sm:$0xff] %vm635, %v618
  %648 = vst.msk [vmem:[%s3 + $0x60] sm:$0xff] %vm635, %v622
  %649 = vst.msk [vmem:[%s3 + $0x68] sm:$0xff] %vm635, %v626
  %650 = vst.msk [vmem:[%s3 + $0x70] sm:$0xff] %vm635, %v630
  %651 = vst.msk [vmem:[%s3 + $0x78] sm:$0xff] %vm635, %v634
  // Predicated region
  $region14: #{channel_attention_pallas.1} parent=0 // pred_check
    _
  $region15: #{channel_attention_pallas.1} parent=0 // pred_check_branch
    %653 = sbr.rel (0) target = $region17
  $region16: #{channel_attention_pallas.1} parent=0 // pred_region
    _
  $region17: #{channel_attention_pallas.1} parent=0 // pred_fallthru
    _
  // Predicated region
  $region18: #{channel_attention_pallas.1} parent=0 // pred_check
    _
  $region19: #{channel_attention_pallas.1} parent=0 // pred_check_branch
    %655 = sbr.rel (0) target = $region21
  $region20: #{channel_attention_pallas.1} parent=0 // pred_region
    _
  $region21: #{channel_attention_pallas.1} parent=0 // pred_fallthru
    _

</llo_original>
